<compile_context>
chip_gen: v6e
topology: v6e:2x2x1
jax: 0.10.0
libtpu: 0.0.40
codegen_flags: <defaults>
</compile_context>

<pallas_src>
import jax
import jax.numpy as jnp
import numpy as np
from jax.experimental import pallas as pl
from jax.experimental.pallas import tpu as pltpu


def _spatial_block_kernel(x_ref, b_ref, bias_ref, o_ref):
    # x_ref:    (bm, C_in*V)       rows = (n, t) slice, lanes = (ci, v)
    # b_ref:    (C_in*V, C_out*V)  folded (conv weight x adjacency x BN scale)
    # bias_ref: (1, C_out*V)       folded (conv bias x A, BN mean/beta), row-broadcast
    # o_ref:    (bm, C_out*V)      rows = (n, t), lanes = (c, w)  -> lane-dense store
    y = jnp.dot(x_ref[...], b_ref[...], preferred_element_type=jnp.float32)
    y = y + bias_ref[...]
    o_ref[...] = jnp.maximum(y, 0.0).astype(o_ref.dtype)


def spatial_block_forward(x_nchw, A, gcn_w, gcn_b,
                          bn_gamma, bn_beta, bn_mean, bn_var,
                          *, max_graph_distance, eps=1e-5):
    """Pallas implementation of Spatial_Block.forward with residual=False."""
    # TODO(synk): residual=True branches (AdaptiveMaxPool2d + BatchNorm [+ 1x1
    # conv]) are not implemented; the module's default config uses residual=False.
    N, C_in, T, V = x_nchw.shape
    K = max_graph_distance + 1
    KC = gcn_w.shape[0]
    C_out = KC // K
    A_k = A[:K]                                            # (K, V, V)

    # --- fold parameters (pure parameter math, done once in XLA) -------------
    # (K*C_out, C_in, 1, 1) -> (K, C_out, C_in); channel index is k*C_out + c.
    W = gcn_w[:, :, 0, 0].reshape(K, C_out, C_in).astype(jnp.float32)
    b2 = gcn_b.reshape(K, C_out).astype(jnp.float32)
    scale = (bn_gamma / jnp.sqrt(bn_var + eps)).astype(jnp.float32)   # (C_out,)

    # Combined operator B[(ci,v),(c,w)] = scale[c] * sum_k W[k,c,ci] * A[k,v,w]
    Bop = jnp.einsum('kci,kvw->ivcw', W, A_k.astype(jnp.float32))
    Bop = (Bop * scale[None, None, :, None]).reshape(C_in * V, C_out * V)

    # Folded bias: conv bias goes through the graph sum, then BN shift.
    bias_cw = jnp.einsum('kc,kvw->cw', b2, A_k.astype(jnp.float32))   # (C_out, V)
    fb = (bias_cw - bn_mean[:, None]) * scale[:, None] + bn_beta[:, None]
    fb = fb.reshape(1, C_out * V).astype(jnp.float32)

    # --- data layout: NCHW -> (N*T, C_in*V), lanes carry (ci, v) -------------
    xm = jnp.transpose(x_nchw, (0, 2, 1, 3)).reshape(N * T, C_in * V)
    xm = xm.astype(jnp.float32)

    M = N * T
    # Two parallel row-blocks when divisible so v7x's two TensorCores both get
    # work; otherwise a single block (whole problem is tiny vs VMEM anyway).
    n_blocks = 2 if (M % 16 == 0) else 1
    bm = M // n_blocks

    out = pl.pallas_call(
        _spatial_block_kernel,
        out_shape=jax.ShapeDtypeStruct((M, C_out * V), x_nchw.dtype),
        grid_spec=pltpu.PrefetchScalarGridSpec(
            num_scalar_prefetch=0,
            grid=(n_blocks,),
            in_specs=[
                pl.BlockSpec((bm, C_in * V), lambda i: (i, 0)),
                pl.BlockSpec((C_in * V, C_out * V), lambda i: (0, 0)),
                pl.BlockSpec((1, C_out * V), lambda i: (0, 0)),
            ],
            out_specs=pl.BlockSpec((bm, C_out * V), lambda i: (i, 0)),
        ),
        compiler_params=pltpu.CompilerParams(
            dimension_semantics=("parallel",)),
    )(xm, Bop, fb)

    # (N*T, C_out*V) -> (N, C_out, T, V)  (NCHW, matching the PyTorch module)
    return jnp.transpose(out.reshape(N, T, C_out, V), (0, 2, 1, 3))


def _reference_forward(x, A, gcn_w, gcn_b, gamma, beta, mean, var, K, eps=1e-5):
    """Pure-JAX reference matching the PyTorch forward (residual=False, eval BN)."""
    N, C_in, T, V = x.shape
    C_out = gcn_w.shape[0] // K
    y = jnp.einsum('nitv,oi->notv', x, gcn_w[:, :, 0, 0]) + gcn_b[None, :, None, None]
    y = y.reshape(N, K, C_out, T, V)
    y = jnp.einsum('nkctv,kvw->nctw', y, A[:K])
    y = (y - mean[None, :, None, None]) * (gamma / jnp.sqrt(var + eps))[None, :, None, None] \
        + beta[None, :, None, None]
    return jnp.maximum(y, 0.0)


if __name__ == "__main__":
    # Module config: Spatial_Block(in_channels=4, out_channels=8,
    #                              max_graph_distance=2, max_frame=16, residual=False)
    N, C_in, C_out, T, V, D = 2, 4, 8, 16, 25, 2
    K = D + 1

    key = jax.random.PRNGKey(0)
    kx, kA, kw, kb, kg, kbeta, km, kv = jax.random.split(key, 8)

    x = jax.random.normal(kx, (N, C_in, T, V), dtype=jnp.float32)              # NCHW
    A = 0.5 * jax.random.normal(kA, (K, V, V), dtype=jnp.float32)              # adjacency stack

    gcn_w = jax.random.normal(kw, (K * C_out, C_in, 1, 1), dtype=jnp.float32) * 0.1
    gcn_b = jax.random.normal(kb, (K * C_out,), dtype=jnp.float32) * 0.1
    bn_gamma = 1.0 + 0.1 * jax.random.normal(kg, (C_out,), dtype=jnp.float32)
    bn_beta = 0.1 * jax.random.normal(kbeta, (C_out,), dtype=jnp.float32)
    bn_mean = 0.1 * jax.random.normal(km, (C_out,), dtype=jnp.float32)
    bn_var = 1.0 + 0.1 * jnp.abs(jax.random.normal(kv, (C_out,), dtype=jnp.float32))

    out = spatial_block_forward(
        x, A, gcn_w, gcn_b, bn_gamma, bn_beta, bn_mean, bn_var,
        max_graph_distance=D)
    out = jax.block_until_ready(out)

    ref = jax.block_until_ready(
        _reference_forward(x, A, gcn_w, gcn_b, bn_gamma, bn_beta, bn_mean, bn_var, K))

    assert out.shape == (N, C_out, T, V), out.shape
    np.testing.assert_allclose(np.asarray(out), np.asarray(ref), rtol=1e-4, atol=1e-4)
    print("KERNEL_OK")
</pallas_src>

<mosaic_0001>
module attributes {stable_mosaic.version = 11 : i64} {
  func.func @_spatial_block_kernel(%arg0: i32, %arg1: memref<16x100xf32, #tpu.memory_space<vmem>>, %arg2: memref<100x200xf32, #tpu.memory_space<vmem>>, %arg3: memref<1x200xf32, #tpu.memory_space<vmem>>, %arg4: memref<16x200xf32, #tpu.memory_space<vmem>>) attributes {dimension_semantics = [#tpu.dimension_semantics<parallel>], iteration_bounds = array<i64: 2>, scalar_prefetch = 0 : i64, scratch_operands = 0 : i64, tpu.core_type = #tpu.core_type<tc>, window_params = [{transform_indices = @transform_0, window_bounds = array<i64: 16, 100>}, {pipeline_mode = #tpu.pipeline_mode<synchronous>, transform_indices = @transform_1, window_bounds = array<i64: 100, 200>}, {pipeline_mode = #tpu.pipeline_mode<synchronous>, transform_indices = @transform_2, window_bounds = array<i64: 1, 200>}, {transform_indices = @transform_3, window_bounds = array<i64: 16, 200>}]} {
    %c0 = arith.constant 0 : index
    %c0_0 = arith.constant 0 : index
    %0 = vector.load %arg1[%c0, %c0_0] : memref<16x100xf32, #tpu.memory_space<vmem>>, vector<16x100xf32>
    %c0_1 = arith.constant 0 : index
    %c0_2 = arith.constant 0 : index
    %1 = vector.load %arg2[%c0_1, %c0_2] : memref<100x200xf32, #tpu.memory_space<vmem>>, vector<100x200xf32>
    %cst = arith.constant dense<0.000000e+00> : vector<16x200xf32>
    %2 = tpu.matmul %0, %1, %cst {dimension_numbers = #tpu.dot_dimension_numbers<[1], [0], [0], [1], [0, 0, 1, 1], [], []>} : vector<16x100xf32>, vector<100x200xf32>, vector<16x200xf32> -> vector<16x200xf32>
    %c0_3 = arith.constant 0 : index
    %c0_4 = arith.constant 0 : index
    %3 = vector.load %arg3[%c0_3, %c0_4] : memref<1x200xf32, #tpu.memory_space<vmem>>, vector<1x200xf32>
    %4 = vector.broadcast %3 : vector<1x200xf32> to vector<16x200xf32>
    %5 = arith.addf %2, %4 : vector<16x200xf32>
    %cst_5 = arith.constant 0.000000e+00 : f32
    %6 = vector.broadcast %cst_5 : f32 to vector<16x200xf32>
    %7 = arith.maximumf %5, %6 : vector<16x200xf32>
    %c0_6 = arith.constant 0 : index
    %c0_7 = arith.constant 0 : index
    %8 = vector.load %arg4[%c0_6, %c0_7] : memref<16x200xf32, #tpu.memory_space<vmem>>, vector<16x200xf32>
    tpu.vector_store %arg4[%c0_6, %c0_7], %7 {strides = array<i32>} : memref<16x200xf32, #tpu.memory_space<vmem>>, vector<16x200xf32>,
    return
  }
  func.func @transform_0(%arg0: i32) -> (i32, i32) {
    %c0_i32 = arith.constant 0 : i32
    %c0_i32_0 = arith.constant 0 : i32
    return %arg0, %c0_i32 : i32, i32
  }
  func.func @transform_1(%arg0: i32) -> (i32, i32) {
    %c0_i32 = arith.constant 0 : i32
    %c0_i32_0 = arith.constant 0 : i32
    %c0_i32_1 = arith.constant 0 : i32
    return %c0_i32, %c0_i32_0 : i32, i32
  }
  func.func @transform_2(%arg0: i32) -> (i32, i32) {
    %c0_i32 = arith.constant 0 : i32
    %c0_i32_0 = arith.constant 0 : i32
    %c0_i32_1 = arith.constant 0 : i32
    return %c0_i32, %c0_i32_0 : i32, i32
  }
  func.func @transform_3(%arg0: i32) -> (i32, i32) {
    %c0_i32 = arith.constant 0 : i32
    %c0_i32_0 = arith.constant 0 : i32
    return %arg0, %c0_i32 : i32, i32
  }
}

</mosaic_0001>

<llo_original>
// kernel: tpu_custom_call.1
$region0: #{tpu_custom_call.1}
  #allocation0 [shape = 'u32[]', space=smem, size = 0x4, offset = 0x4, fixed_abs, tag = 'smem constant byte address 0x4 - core index']
  #allocation1 [shape = 'u32[144,128]{1,0:T(1,128)}', space=vmem, size = 0x12000, scoped, tag = 'internal scratch']
  %s0 = inlined_call_operand.vmem [shape: f32[32,100], index: 0, kind: input, shape index: {}]
  %s1 = inlined_call_operand.vmem [shape: f32[100,200], index: 1, kind: input, shape index: {}]
  %s2 = inlined_call_operand.vmem [shape: f32[1,200], index: 2, kind: input, shape index: {}]
  %s3 = inlined_call_operand.hbm [shape: f32[32,200], index: 3, kind: output, shape index: {}]
  %s4 = sld [smem:[#allocation0]]
  $region45: #{tpu_custom_call.1} parent=0
    _
  %s6 = ssub.s32 1, %s4
  %s7 = scalar_select 0, %s6, %s4
  $region1: #{tpu_custom_call.1} parent=0
    #allocation2 [shape = 'u8[32768]{0}', space=vmem, size = 0x8000, scoped, tag = 'output window, operand 0']
    #allocation3 [shape = 's32[2]{0}', space=sflag, size = 0x8, scoped, tag = 'scoped memory for tpu_custom_call.1']
    %8 = vsyncpa [#allocation3], 0
    %s9 = scalar_lea.sflag [#allocation3], 1
    %10 = vsyncpa %s9, 0
    loop: start=0, step=1, limit=4
    $region2: #{tpu_custom_call.1} parent=1 // loop_pre_header
      _
    $region3: #{tpu_custom_call.1} parent=1 // loop_header
      %s12 = sphi 0, %s16
      %p13 = scmp.ge.s32.totalorder %s12, 4
      %s22 = sphi 0, %s24
      %s25 = sphi 0, %s22
      %s26 = sphi 0, %s25
      %s42 = sphi 0, %s26
      %s46 = sphi 0, %s46
      %s48 = sphi 0, %s46
      %s49 = sphi 0, %s48
      %s63 = sphi 0, %s49
      %s67 = sphi 0, %s67
      %s69 = sphi 0, %s67
      %s70 = sphi 0, %s69
      %s84 = sphi 0, %s70
      %s90 = sphi 0, %s92
      %s93 = sphi 0, %s90
      %s94 = sphi 0, %s93
      %s110 = sphi 0, %s94
    $region4: #{tpu_custom_call.1} parent=1 // loop_header_branch
      %15 = sbr.rel (%p13) target = $region8
    $region5: #{tpu_custom_call.1} parent=1 // loop_body
      %s17 = ssub.s32 %s12, 1
      %s18 = ssub.s32 %s12, 2
      %s19 = sadd.s32 %s12, 1
      %s20 = ssub.s32 %s12, %s19
      %p21 = scmp.eq.s32.totalorder %s20, 0
      %s23 = sadd.s32 %s22, 1
      %s24 = scalar_select %p21, %s22, %s23
      %p27 = pneg %p21
      %p28 = scmp.eq.s32.totalorder %s12, 1
      %p29 = por %p27, %p28
      %p30 = scmp.ne.s32.totalorder %s22, %s25
      %p31 = scmp.eq.s32.totalorder %s12, 0
      %p32 = por %p30, %p31
      %p33 = scmp.ne.s32.totalorder %s22, %s25
      %p34 = scmp.eq.s32.totalorder %s17, 1
      %p35 = por %p33, %p34
      %p36 = scmp.ne.s32.totalorder %s25, %s26
      %p37 = scmp.eq.s32.totalorder %s17, 0
      %p38 = por %p36, %p37
      %p39 = scmp.ne.s32.totalorder %s25, %s26
      %p40 = scmp.eq.s32.totalorder %s18, 1
      %p41 = por %p39, %p40
      %p43 = scmp.ne.s32.totalorder %s26, %s42
      %p44 = scmp.eq.s32.totalorder %s18, 0
      %p45 = por %p43, %p44
      %s47 = sadd.s32 %s46, 1
      %p50 = scmp.eq.s32.totalorder %s12, 1
      %p51 = scmp.ne.s32.totalorder %s46, %s48
      %p52 = scmp.eq.s32.totalorder %s12, 0
      %p53 = por %p51, %p52
      %p54 = scmp.ne.s32.totalorder %s46, %s48
      %p55 = scmp.eq.s32.totalorder %s17, 1
      %p56 = por %p54, %p55
      %p57 = scmp.ne.s32.totalorder %s48, %s49
      %p58 = scmp.eq.s32.totalorder %s17, 0
      %p59 = por %p57, %p58
      %p60 = scmp.ne.s32.totalorder %s48, %s49
      %p61 = scmp.eq.s32.totalorder %s18, 1
      %p62 = por %p60, %p61
      %p64 = scmp.ne.s32.totalorder %s49, %s63
      %p65 = scmp.eq.s32.totalorder %s18, 0
      %p66 = por %p64, %p65
      %s68 = sadd.s32 %s67, 1
      %p71 = scmp.eq.s32.totalorder %s12, 1
      %p72 = scmp.ne.s32.totalorder %s67, %s69
      %p73 = scmp.eq.s32.totalorder %s12, 0
      %p74 = por %p72, %p73
      %p75 = scmp.ne.s32.totalorder %s67, %s69
      %p76 = scmp.eq.s32.totalorder %s17, 1
      %p77 = por %p75, %p76
      %p78 = scmp.ne.s32.totalorder %s69, %s70
      %p79 = scmp.eq.s32.totalorder %s17, 0
      %p80 = por %p78, %p79
      %p81 = scmp.ne.s32.totalorder %s69, %s70
      %p82 = scmp.eq.s32.totalorder %s18, 1
      %p83 = por %p81, %p82
      %p85 = scmp.ne.s32.totalorder %s70, %s84
      %p86 = scmp.eq.s32.totalorder %s18, 0
      %p87 = por %p85, %p86
      %s88 = ssub.s32 %s12, %s19
      %p89 = scmp.eq.s32.totalorder %s88, 0
      %s91 = sadd.s32 %s90, 1
      %s92 = scalar_select %p89, %s90, %s91
      %p95 = pneg %p89
      %p96 = scmp.eq.s32.totalorder %s12, 1
      %p97 = por %p95, %p96
      %p98 = scmp.ne.s32.totalorder %s90, %s93
      %p99 = scmp.eq.s32.totalorder %s12, 0
      %p100 = por %p98, %p99
      %p101 = scmp.ne.s32.totalorder %s90, %s93
      %p102 = scmp.eq.s32.totalorder %s17, 1
      %p103 = por %p101, %p102
      %p104 = scmp.ne.s32.totalorder %s93, %s94
      %p105 = scmp.eq.s32.totalorder %s17, 0
      %p106 = por %p104, %p105
      %p107 = scmp.ne.s32.totalorder %s93, %s94
      %p108 = scmp.eq.s32.totalorder %s18, 1
      %p109 = por %p107, %p108
      %p111 = scmp.ne.s32.totalorder %s94, %s110
      %p112 = scmp.eq.s32.totalorder %s18, 0
      %p113 = por %p111, %p112
      %p114 = scmp.le.s32.totalorder 1, %s12
      %p115 = scmp.lt.s32.totalorder %s12, 3
      %p116 = pnand %p114, %p115
      %p117 = pneg %p116
      // Predicated region
      $region9: #{tpu_custom_call.1} parent=5 // pred_check
        _
      $region10: #{tpu_custom_call.1} parent=5 // pred_check_branch
        %119 = sbr.rel (%p116) target = $region12
      $region11: #{tpu_custom_call.1} parent=5 // pred_region
        %s120 = ssub.s32 %s12, 1
        // Predicated region
        $region13: #{tpu_custom_call.1} parent=11 // pred_check
          %p121 = pneg %p59
        $region14: #{tpu_custom_call.1} parent=11 // pred_check_branch
          %123 = sbr.rel (%p121) target = $region16
        $region15: #{tpu_custom_call.1} parent=11 // pred_region
          _
        $region16: #{tpu_custom_call.1} parent=11 // pred_fallthru
          _
        // Predicated region
        $region17: #{tpu_custom_call.1} parent=11 // pred_check
          %p124 = pneg %p80
        $region18: #{tpu_custom_call.1} parent=11 // pred_check_branch
          %126 = sbr.rel (%p124) target = $region20
        $region19: #{tpu_custom_call.1} parent=11 // pred_region
          _
        $region20: #{tpu_custom_call.1} parent=11 // pred_fallthru
          _
      $region12: #{tpu_custom_call.1} parent=5 // pred_fallthru
        _
      %p127 = scmp.lt.s32.totalorder %s12, 2
      // Predicated region
      $region21: #{tpu_custom_call.1} parent=5 // pred_check
        %p128 = pneg %p127
      $region22: #{tpu_custom_call.1} parent=5 // pred_check_branch
        %130 = sbr.rel (%p128) target = $region24
      $region23: #{tpu_custom_call.1} parent=5 // pred_region
        // Predicated region
        $region25: #{tpu_custom_call.1} parent=23 // pred_check
          %p131 = pneg %p32
        $region26: #{tpu_custom_call.1} parent=23 // pred_check_branch
          %133 = sbr.rel (%p131) target = $region28
        $region27: #{tpu_custom_call.1} parent=23 // pred_region
          %s134 = smul.u32 2, %s12
          %p135 = scmp.lt.s32.totalorder %s134, 3
          %s136 = scalar_select %p135, %s134, 3
          %s137 = smul.addr %s136, 8
          %s138 = scalar_lea.vmem %s0, %s137
          %s139 = smul.u32 2, %s12
        $region28: #{tpu_custom_call.1} parent=23 // pred_fallthru
          _
      $region24: #{tpu_custom_call.1} parent=5 // pred_fallthru
        _
      %p140 = scmp.le.s32.totalorder 1, %s12
      %p141 = scmp.lt.s32.totalorder %s12, 3
      %p142 = pnand %p140, %p141
      %p143 = pneg %p142
      // Predicated region
      $region29: #{tpu_custom_call.1} parent=5 // pred_check
        _
      $region30: #{tpu_custom_call.1} parent=5 // pred_check_branch
        %145 = sbr.rel (%p142) target = $region32
      $region31: #{tpu_custom_call.1} parent=5 // pred_region
        %s146 = ssub.s32 %s12, 1
        %s147 = smul.u32 2, %s17
        %p148 = scmp.lt.s32.totalorder %s147, 3
        %s149 = scalar_select %p148, %s147, 3
        %s150 = smul.addr %s149, 8
        %s151 = scalar_lea.vmem %s0, %s150
        %p152 = pneg %p38
        %p153 = pneg %p35
        %p154 = pneg %p59
        %p155 = pneg %p56
        %p156 = pneg %p80
        %p157 = pneg %p77
        %p158 = pneg %p106
        %p159 = pneg %p103
        %s160 = sand.u32 %s93, 1
        %s161 = scalar_lea.sflag [#allocation3], %s160
        %s162 = sand.u32 %s93, 1
        %s163 = smul.addr %s162, 32
        %s164 = scalar_lea.vmem [#allocation2], %s163
        %s165 = smul.u32 2, %s17
        %p166 = scmp.lt.s32.totalorder %s165, 3
        %s167 = scalar_select %p166, %s165, 3
        %s168 = smul.addr %s167, 8
        %s169 = scalar_lea.vmem %s0, %s168
        %s170 = smul.u32 2, %s17
        %s171 = smul.u32 2, %s17
        %v172 = vld [vmem:[%s169] sm:$0xff]
        %v173 = vld [vmem:[%s169 + $0x8] sm:$0xff]
        %v174 = vld [vmem:[%s1] sm:$0xff]
        %v175 = vld [vmem:[%s1 + $0x8] sm:$0xff]
        %v176 = vld [vmem:[%s1 + $0x10] sm:$0xff]
        %v177 = vld [vmem:[%s1 + $0x18] sm:$0xff]
        %v178 = vld [vmem:[%s1 + $0x20] sm:$0xff]
        %v179 = vld [vmem:[%s1 + $0x28] sm:$0xff]
        %v180 = vld [vmem:[%s1 + $0x30] sm:$0xff]
        %v181 = vld [vmem:[%s1 + $0x38] sm:$0xff]
        %v182 = vld [vmem:[%s1 + $0x40] sm:$0xff]
        %v183 = vld [vmem:[%s1 + $0x48] sm:$0xff]
        %v184 = vld [vmem:[%s1 + $0x50] sm:$0xff]
        %v185 = vld [vmem:[%s1 + $0x58] sm:$0xff]
        %v186 = vld [vmem:[%s1 + $0x60] sm:$0xff]
        %v187 = vld [vmem:[%s1 + $0x68] sm:$0xff]
        %v188 = vld [vmem:[%s1 + $0x70] sm:$0xff]
        %v189 = vld [vmem:[%s1 + $0x78] sm:$0xff]
        %v190 = vld [vmem:[%s1 + $0x80] sm:$0xff]
        %v191 = vld [vmem:[%s1 + $0x88] sm:$0xff]
        %v192 = vld [vmem:[%s1 + $0x90] sm:$0xff]
        %v193 = vld [vmem:[%s1 + $0x98] sm:$0xff]
        %v194 = vld [vmem:[%s1 + $0xa0] sm:$0xff]
        %v195 = vld [vmem:[%s1 + $0xa8] sm:$0xff]
        %v196 = vld [vmem:[%s1 + $0xb0] sm:$0xff]
        %v197 = vld [vmem:[%s1 + $0xb8] sm:$0xff]
        %v198 = vld [vmem:[%s1 + $0xc0] sm:$0xf]
        %v199 = vld [vmem:[%s1 + $0xc8] sm:$0xf]
        %v200 = vld [vmem:[%s2] sm:$0x3]
        %v202 = vlaneseq
        %v203 = vshrl.u32 %v202, 7
        %v204 = vsub.s32 0, %v203
        %v205 = vrot.slane %v200, %v204
        %v206 = vlaneseq
        %v207 = vshrl.u32 %v206, 7
        %v208 = vsub.s32 1, %v207
        %v209 = vrot.slane %v200, %v208
        %vm212 = vcmask 818176
        %v214 = vsel %vm212, %v172, 0
        %v217 = vsel %vm212, %v173, 0
        %vm219 = vcmask 1043456
        %v221 = vsel %vm219, %v198, 0
        %v224 = vsel %vm219, %v199, 0
        %226 = vmatprep.subr.mxu0 0.0
        %227 = vmatpush1.msra.mxu0 0.0
        %228 = vmatprep.subr.mxu0 0.0
        %229 = vmatpush1.msra.mxu0 0.0
        %230 = vmatprep.subr.mxu0 0.0
        %231 = vmatpush1.msra.mxu0 0.0
        %232 = vmatprep.subr.mxu0 %v224
        %233 = vmatpush1.msra.mxu0 %v221
        %234 = vmatprep.subr.mxu0 %v197
        %235 = vmatpush1.msra.mxu0 %v196
        %236 = vmatprep.subr.mxu0 %v195
        %237 = vmatpush1.msra.mxu0 %v194
        %238 = vmatprep.subr.mxu0 %v193
        %239 = vmatpush1.msra.mxu0 %v192
        %240 = vmatprep.subr.mxu0 %v191
        %241 = vmatpush1.msra.mxu0 %v190
        %242 = vmatprep.subr.mxu0 %v189
        %243 = vmatpush1.msra.mxu0 %v188
        %244 = vmatprep.subr.mxu0 %v187
        %245 = vmatpush1.msra.mxu0 %v186
        %246 = vmatprep.subr.mxu0 %v185
        %247 = vmatpush1.msra.mxu0 %v184
        %248 = vmatprep.subr.mxu0 %v183
        %249 = vmatpush1.msra.mxu0 %v182
        %250 = vmatprep.subr.mxu0 %v181
        %251 = vmatpush1.msra.mxu0 %v180
        %252 = vmatprep.subr.mxu0 %v179
        %253 = vmatpush1.msra.mxu0 %v178
        %254 = vmatprep.subr.mxu0 %v177
        %255 = vmatpush1.msra.mxu0 %v176
        %256 = vmatprep.subr.mxu0 %v175
        %257 = vmatpush1.msra.mxu0 %v174
        %258 = vmatprep.subr.mxu0 0.0
        %259 = vmatpush2.msra.mxu0 0.0
        %260 = vmatprep.subr.mxu0 0.0
        %261 = vmatpush2.msra.mxu0 0.0
        %262 = vmatprep.subr.mxu0 0.0
        %263 = vmatpush2.msra.mxu0 0.0
        %264 = vmatprep.subr.mxu0 0.0
        %265 = vmatpush2.msra.mxu0 0.0
        %266 = vmatprep.subr.mxu0 0.0
        %267 = vmatpush2.msra.mxu0 0.0
        %268 = vmatprep.subr.mxu0 0.0
        %269 = vmatpush2.msra.mxu0 0.0
        %270 = vmatprep.subr.mxu0 0.0
        %271 = vmatpush2.msra.mxu0 0.0
        %272 = vmatprep.subr.mxu0 0.0
        %273 = vmatpush2.msra.mxu0 0.0
        %274 = vmatprep.subr.mxu0 0.0
        %275 = vmatpush2.msra.mxu0 0.0
        %276 = vmatprep.subr.mxu0 0.0
        %277 = vmatpush2.msra.mxu0 0.0
        %278 = vmatprep.subr.mxu0 0.0
        %279 = vmatpush2.msra.mxu0 0.0
        %280 = vmatprep.subr.mxu0 0.0
        %281 = vmatpush2.msra.mxu0 0.0
        %282 = vmatprep.subr.mxu0 0.0
        %283 = vmatpush2.msra.mxu0 0.0
        %284 = vmatprep.subr.mxu0 0.0
        %285 = vmatpush2.msra.mxu0 0.0
        %286 = vmatprep.subr.mxu0 0.0
        %287 = vmatpush2.msra.mxu0 0.0
        %288 = vmatprep.subr.mxu0 0.0
        %289 = vmatpush2.msra.mxu0 0.0
        %290 = vmatprep.mubr.f32.mxu0 0.0
        %291 = vmatmul.mubr.f32.gmra.mxu0 %v214
        %v292 = vpop.f32.mrf.mxu0
        %v293 = vadd.f32 %v205, %v292
        %v294 = vpop.f32.mrf.mxu0
        %v295 = vadd.f32 %v209, %v294
        %296 = vmatprep.mubr.f32.mxu0 0.0
        %297 = vmatmul.mubr.f32.gmra.mxu0 %v217
        %v298 = vpop.f32.mrf.mxu0
        %v299 = vadd.f32 %v205, %v298
        %v300 = vpop.f32.mrf.mxu0
        %v301 = vadd.f32 %v209, %v300
        %302 = vdwg.mxu0
        %v303 = vmax.f32 %v293, 0.0
        %v304 = vmax.f32 %v295, 0.0
        %v305 = vmax.f32 %v299, 0.0
        %v306 = vmax.f32 %v301, 0.0
        %307 = vst [vmem:[%s164] sm:$0xff] %v303
        %vm308 = vcmask 588800
        %309 = vst.msk [vmem:[%s164 + $0x8] sm:$0xff] %vm308, %v304
        %310 = vst [vmem:[%s164 + $0x10] sm:$0xff] %v305
        %311 = vst.msk [vmem:[%s164 + $0x18] sm:$0xff] %vm308, %v306
        %s312 = sand.u32 %s93, 1
        %s313 = scalar_lea.sflag [#allocation3], %s312
        %s314 = sand.u32 %s93, 1
        %s315 = smul.addr %s314, 32
        %s316 = scalar_lea.vmem [#allocation2], %s315
        // Predicated region
        $region33: #{tpu_custom_call.1} parent=31 // pred_check
          %p317 = pneg %p103
        $region34: #{tpu_custom_call.1} parent=31 // pred_check_branch
          %319 = sbr.rel (%p317) target = $region36
        $region35: #{tpu_custom_call.1} parent=31 // pred_region
          %s320 = smul.u32 2, %s17
          %s322 = ssub.s32 512, 512
          %323 = vsyncadd %s313, %s322
          %s324 = smul.addr %s320, 2
          %s325 = smul.addr %s324, 128
          %s326 = scalar_lea.hbm %s3, %s325
          %s327 = sshll.u32 %s316, 4
          %s328 = int_to_ptr.vmem [resolvable:$true] %s327
          %333 = dma.vmem_to_hbm [thread:$0]  %s328, 512, %s326, %s313, 256, 256, 16
        $region36: #{tpu_custom_call.1} parent=31 // pred_fallthru
          _
      $region32: #{tpu_custom_call.1} parent=5 // pred_fallthru
        _
      %p334 = scmp.le.s32.totalorder 2, %s12
      // Predicated region
      $region37: #{tpu_custom_call.1} parent=5 // pred_check
        %p335 = pneg %p334
      $region38: #{tpu_custom_call.1} parent=5 // pred_check_branch
        %337 = sbr.rel (%p335) target = $region40
      $region39: #{tpu_custom_call.1} parent=5 // pred_region
        %s338 = ssub.s32 %s12, 2
        // Predicated region
        $region41: #{tpu_custom_call.1} parent=39 // pred_check
          %p339 = pneg %p109
        $region42: #{tpu_custom_call.1} parent=39 // pred_check_branch
          %341 = sbr.rel (%p339) target = $region44
        $region43: #{tpu_custom_call.1} parent=39 // pred_region
          %s342 = sand.u32 %s94, 1
          %s343 = scalar_lea.sflag [#allocation3], %s342
          %s344 = sand.u32 %s94, 1
          %s345 = smul.addr %s344, 32
          %s346 = scalar_lea.vmem [#allocation2], %s345
          %347 = dma.done %s343, 512
        $region44: #{tpu_custom_call.1} parent=39 // pred_fallthru
          _
      $region40: #{tpu_custom_call.1} parent=5 // pred_fallthru
        _
    $region6: #{tpu_custom_call.1} parent=1 // loop_footer
      %s16 = sadd.s32 1, %s12
    $region7: #{tpu_custom_call.1} parent=1 // loop_footer_branch
      %11 = sbr.rel target = $region3
    $region8: #{tpu_custom_call.1} parent=1 // loop_exit
      _
    %348 = vsyncpa [#allocation3], 1
    %s349 = scalar_lea.sflag [#allocation3], 1
    %350 = vsyncpa %s349, 1

</llo_original>
